<compile_context>
chip_gen: v5e
topology: v5e:2x2
jax: 0.10.0
libtpu: 0.0.40
codegen_flags: <defaults>
</compile_context>

<pallas_src>
import jax
import jax.numpy as jnp
from jax.experimental import pallas as pl
from jax.experimental.pallas import tpu as pltpu


# ----------------------------------------------------------------------------
# small helpers
# ----------------------------------------------------------------------------
def _round_up(x, m):
    return (x + m - 1) // m * m


def _pad2d(a, rows, cols):
    r, c = a.shape
    return jnp.pad(a, ((0, rows - r), (0, cols - c)))


def _full(shape):
    return pl.BlockSpec(shape, lambda i: (0,) * len(shape))


def _geometry(cfg):
    k, s, p, op = cfg["kernel"], cfg["stride"], cfg["padding"], cfg["output_padding"]
    H, W = cfg["H"], cfg["W"]
    Ho = (H + 2 * p - k) // s + 1
    Wo = (W + 2 * p - k) // s + 1
    Hr = (Ho - 1) * s - 2 * p + k + op
    Wr = (Wo - 1) * s - 2 * p + k + op
    f_in = cfg["cin"] * H * W
    f_enc = cfg["chid"] * Ho * Wo
    f_rec = cfg["cin"] * Hr * Wr
    return dict(
        Ho=Ho, Wo=Wo, Hr=Hr, Wr=Wr,
        f_in=f_in, f_enc=f_enc, f_rec=f_rec,
        f_in_p=_round_up(f_in, 128), f_enc_p=_round_up(f_enc, 128),
        f_rec_p=_round_up(f_rec, 128),
        ip=_round_up(cfg["inter_dim"], 128), lp=_round_up(cfg["latent_dim"], 128))


# ----------------------------------------------------------------------------
# Weight prep: fold the (tiny) conv / convT into dense matrices, pre-transpose
# the linears to (K, N), pad everything to lane-dense multiples of 128, bf16.
# (One-time parameter transformation; not part of the per-input forward.)
# ----------------------------------------------------------------------------
def _conv_as_matrix(w_oihw, b, H, W, stride, padding):
    """Dense M, bias with flatten_nchw(Conv2d(x)) == flatten_nchw(x) @ M + bias."""
    cout, cin, _, _ = w_oihw.shape
    eye = jnp.eye(cin * H * W, dtype=jnp.float32).reshape(cin * H * W, cin, H, W)
    out = jax.lax.conv_general_dilated(
        eye, w_oihw.astype(jnp.float32), (stride, stride),
        [(padding, padding), (padding, padding)],
        dimension_numbers=("NCHW", "OIHW", "NCHW"))
    _, co, Ho, Wo = out.shape
    bias = jnp.broadcast_to(b[:, None, None], (co, Ho, Wo)).reshape(1, co * Ho * Wo)
    return out.reshape(cin * H * W, co * Ho * Wo), bias


def _conv_transpose_as_matrix(w_iohw, b, H, W, stride, padding, output_padding):
    """Same, for PyTorch ConvTranspose2d (weight layout (Cin, Cout, kh, kw))."""
    cin, cout, kh, kw = w_iohw.shape
    w_direct = jnp.flip(w_iohw, axis=(2, 3)).transpose(1, 0, 2, 3)  # OIHW, flipped
    lo_h, hi_h = kh - 1 - padding, kh - 1 - padding + output_padding
    lo_w, hi_w = kw - 1 - padding, kw - 1 - padding + output_padding
    eye = jnp.eye(cin * H * W, dtype=jnp.float32).reshape(cin * H * W, cin, H, W)
    out = jax.lax.conv_general_dilated(
        eye, w_direct.astype(jnp.float32), (1, 1),
        [(lo_h, hi_h), (lo_w, hi_w)], lhs_dilation=(stride, stride),
        dimension_numbers=("NCHW", "OIHW", "NCHW"))
    _, co, Ho, Wo = out.shape
    bias = jnp.broadcast_to(b[:, None, None], (co, Ho, Wo)).reshape(1, co * Ho * Wo)
    return out.reshape(cin * H * W, co * Ho * Wo), bias


def prepare_params(params, cfg):
    d = _geometry(cfg)
    assert d["f_enc"] == d["f_in"], (
        "Module requires chid*(H/stride)*(W/stride) == cin*H*W "
        "(fc1 is sized on the input flat dim but fed the encoder output).")
    pp = {}

    # encoder Conv2d folded to a dense (f_in, f_enc) matrix (NCHW flatten order)
    wenc, benc = _conv_as_matrix(params["enc_w"], params["enc_b"],
                                 cfg["H"], cfg["W"], cfg["stride"], cfg["padding"])
    pp["wenc"] = _pad2d(wenc, d["f_in_p"], d["f_enc_p"]).astype(jnp.bfloat16)
    pp["benc"] = _pad2d(benc, 1, d["f_enc_p"])

    # decoder ConvTranspose2d folded to a dense (f_enc, f_rec) matrix
    wdec, bdec = _conv_transpose_as_matrix(
        params["dec_w"], params["dec_b"], d["Ho"], d["Wo"],
        cfg["stride"], cfg["padding"], cfg["output_padding"])
    pp["wdec"] = _pad2d(wdec, d["f_enc_p"], d["f_rec_p"]).astype(jnp.bfloat16)
    pp["bdec"] = _pad2d(bdec, 1, d["f_rec_p"])

    # FC stack: PyTorch (out, in) -> (in, out), padded to multiples of 128
    pp["w1"] = _pad2d(params["fc1_w"].T, d["f_enc_p"], d["ip"]).astype(jnp.bfloat16)
    pp["b1"] = _pad2d(params["fc1_b"][None, :], 1, d["ip"])

    # fc_mu | fc_logvar merged into one (inter, 2*latent_p) matmul
    w_mu = _pad2d(params["fc_mu_w"].T, d["ip"], d["lp"])
    w_lv = _pad2d(params["fc_lv_w"].T, d["ip"], d["lp"])
    pp["wmulv"] = jnp.concatenate([w_mu, w_lv], axis=1).astype(jnp.bfloat16)
    b_mu = _pad2d(params["fc_mu_b"][None, :], 1, d["lp"])
    b_lv = _pad2d(params["fc_lv_b"][None, :], 1, d["lp"])
    pp["bmulv"] = jnp.concatenate([b_mu, b_lv], axis=1)

    pp["wd1"] = _pad2d(params["dec_fc1_w"].T, d["lp"], d["ip"]).astype(jnp.bfloat16)
    pp["bd1"] = _pad2d(params["dec_fc1_b"][None, :], 1, d["ip"])
    pp["wd2"] = _pad2d(params["dec_fc2_w"].T, d["ip"], d["f_enc_p"]).astype(jnp.bfloat16)
    pp["bd2"] = _pad2d(params["dec_fc2_b"][None, :], 1, d["f_enc_p"])
    return pp


# ----------------------------------------------------------------------------
# The single fused Pallas kernel: encoder conv -> fc1 -> (mu|logvar) ->
# reparameterize -> Decode linears -> decoder convT.  Everything on-chip.
# ----------------------------------------------------------------------------
def _vae_fused_kernel(x_ref, eps_ref,
                      wenc_ref, benc_ref, w1_ref, b1_ref,
                      wmulv_ref, bmulv_ref, wd1_ref, bd1_ref,
                      wd2_ref, bd2_ref, wdec_ref, bdec_ref,
                      rec_ref, mu_ref, lv_ref, z_ref):
    f32 = jnp.float32
    bf16 = jnp.bfloat16

    # encoder Conv2d (folded) + bias + ReLU
    x = x_ref[...].astype(bf16)
    enc = jnp.dot(x, wenc_ref[...], preferred_element_type=f32) + benc_ref[...]
    enc = jnp.maximum(enc, 0.0)

    # fc1 + ReLU
    h = jnp.dot(enc.astype(bf16), w1_ref[...],
                preferred_element_type=f32) + b1_ref[...]
    h = jnp.maximum(h, 0.0)

    # fc_mu | fc_logvar (merged matmul), then reparameterize
    mulv = jnp.dot(h.astype(bf16), wmulv_ref[...],
                   preferred_element_type=f32) + bmulv_ref[...]
    lp = mu_ref.shape[-1]
    mu = mulv[:, :lp]
    lv = mulv[:, lp:]
    z = mu + eps_ref[...] * jnp.exp(0.5 * lv)
    mu_ref[...] = mu
    lv_ref[...] = lv
    z_ref[...] = z

    # Decode: Linear(latent->inter) + ReLU + Linear(inter->enc_flat)
    dcd = jnp.dot(z.astype(bf16), wd1_ref[...],
                  preferred_element_type=f32) + bd1_ref[...]
    dcd = jnp.maximum(dcd, 0.0)
    dcd = jnp.dot(dcd.astype(bf16), wd2_ref[...],
                  preferred_element_type=f32) + bd2_ref[...]

    # decoder ConvTranspose2d (folded) + bias
    rec_ref[...] = jnp.dot(dcd.astype(bf16), wdec_ref[...],
                           preferred_element_type=f32) + bdec_ref[...]


def make_vae_forward(cfg):
    d = _geometry(cfg)
    assert d["f_enc"] == d["f_in"]

    def forward(pp, x, eps):
        B = x.shape[0]
        bp = _round_up(B, 8)      # sublane granule; keeps tiles (8,128)-aligned
        # NCHW flatten == torch.flatten(x, 1); only tiny pads remain as glue.
        x_flat = x.reshape(B, d["f_in"])
        x_flat = jnp.pad(x_flat, ((0, bp - B), (0, d["f_in_p"] - d["f_in"])))
        eps_p = jnp.pad(eps, ((0, bp - B), (0, d["lp"] - cfg["latent_dim"])))

        mm = (d["f_in_p"] * d["f_enc_p"] + d["f_enc_p"] * d["ip"]
              + d["ip"] * 2 * d["lp"] + d["lp"] * d["ip"]
              + d["ip"] * d["f_enc_p"] + d["f_enc_p"] * d["f_rec_p"])
        b_elems = (2 * d["f_enc_p"] + 2 * d["ip"] + 2 * d["lp"] + d["f_rec_p"])
        io_bytes = 4 * bp * (d["f_in_p"] + 4 * d["lp"] + d["f_rec_p"])
        cost = pl.CostEstimate(flops=2 * bp * mm, transcendentals=bp * d["lp"],
                               bytes_accessed=2 * mm + 4 * b_elems + io_bytes)

        rec_p, mu_p, lv_p, z_p = pl.pallas_call(
            _vae_fused_kernel,
            out_shape=(jax.ShapeDtypeStruct((bp, d["f_rec_p"]), jnp.float32),
                       jax.ShapeDtypeStruct((bp, d["lp"]), jnp.float32),
                       jax.ShapeDtypeStruct((bp, d["lp"]), jnp.float32),
                       jax.ShapeDtypeStruct((bp, d["lp"]), jnp.float32)),
            grid=(1,),
            in_specs=[_full((bp, d["f_in_p"])), _full((bp, d["lp"])),
                      _full((d["f_in_p"], d["f_enc_p"])), _full((1, d["f_enc_p"])),
                      _full((d["f_enc_p"], d["ip"])), _full((1, d["ip"])),
                      _full((d["ip"], 2 * d["lp"])), _full((1, 2 * d["lp"])),
                      _full((d["lp"], d["ip"])), _full((1, d["ip"])),
                      _full((d["ip"], d["f_enc_p"])), _full((1, d["f_enc_p"])),
                      _full((d["f_enc_p"], d["f_rec_p"])), _full((1, d["f_rec_p"]))],
            out_specs=(_full((bp, d["f_rec_p"])), _full((bp, d["lp"])),
                       _full((bp, d["lp"])), _full((bp, d["lp"]))),
            compiler_params=pltpu.CompilerParams(
                dimension_semantics=("arbitrary",),
                vmem_limit_bytes=32 * 1024 * 1024),
            cost_estimate=cost,
        )(x_flat, eps_p, pp["wenc"], pp["benc"], pp["w1"], pp["b1"],
          pp["wmulv"], pp["bmulv"], pp["wd1"], pp["bd1"],
          pp["wd2"], pp["bd2"], pp["wdec"], pp["bdec"])

        L = cfg["latent_dim"]
        rec = rec_p[:B, :d["f_rec"]].reshape(B, cfg["cin"], d["Hr"], d["Wr"])
        return rec, mu_p[:B, :L], lv_p[:B, :L], z_p[:B, :L]

    return forward


# ----------------------------------------------------------------------------
# Pure-JAX f32 reference (mirrors the PyTorch forward) for a tolerance check.
# ----------------------------------------------------------------------------
def reference_forward(params, x, eps, cfg):
    s, p, k, op = cfg["stride"], cfg["padding"], cfg["kernel"], cfg["output_padding"]
    enc = jax.lax.conv_general_dilated(
        x, params["enc_w"], (s, s), [(p, p), (p, p)],
        dimension_numbers=("NCHW", "OIHW", "NCHW"))
    enc = jnp.maximum(enc + params["enc_b"][None, :, None, None], 0.0)
    B = x.shape[0]
    x_flat = enc.reshape(B, -1)
    h = jnp.maximum(x_flat @ params["fc1_w"].T + params["fc1_b"], 0.0)
    mu = h @ params["fc_mu_w"].T + params["fc_mu_b"]
    logvar = h @ params["fc_lv_w"].T + params["fc_lv_b"]
    z = mu + eps * jnp.exp(0.5 * logvar)
    dcd = jnp.maximum(z @ params["dec_fc1_w"].T + params["dec_fc1_b"], 0.0)
    dcd = dcd @ params["dec_fc2_w"].T + params["dec_fc2_b"]
    d_img = dcd.reshape(enc.shape)
    w_direct = jnp.flip(params["dec_w"], axis=(2, 3)).transpose(1, 0, 2, 3)
    rec = jax.lax.conv_general_dilated(
        d_img, w_direct, (1, 1), [(k - 1 - p, k - 1 - p + op)] * 2,
        lhs_dilation=(s, s), dimension_numbers=("NCHW", "OIHW", "NCHW"))
    rec = rec + params["dec_b"][None, :, None, None]
    return rec, mu, logvar, z


# ----------------------------------------------------------------------------
# Deterministic parameter init
# ----------------------------------------------------------------------------
def xavier_uniform(key, shape, fan_in, fan_out):
    limit = (6.0 / (fan_in + fan_out)) ** 0.5
    return jax.random.uniform(key, shape, jnp.float32, -limit, limit)


def init_params(key, cin, chid, inter_dim, latent_dim, enc_flat):
    ks = jax.random.split(key, 8)
    p = {}
    p["enc_w"] = 0.1 * jax.random.normal(ks[0], (chid, cin, 3, 3), jnp.float32)
    p["enc_b"] = jnp.zeros((chid,), jnp.float32)
    p["fc1_w"] = xavier_uniform(ks[1], (inter_dim, enc_flat), enc_flat, inter_dim)
    p["fc1_b"] = jnp.zeros((inter_dim,), jnp.float32)
    p["fc_mu_w"] = xavier_uniform(ks[2], (latent_dim, inter_dim), inter_dim, latent_dim)
    p["fc_mu_b"] = jnp.zeros((latent_dim,), jnp.float32)
    p["fc_lv_w"] = xavier_uniform(ks[3], (latent_dim, inter_dim), inter_dim, latent_dim)
    p["fc_lv_b"] = jnp.zeros((latent_dim,), jnp.float32)
    p["dec_fc1_w"] = xavier_uniform(ks[4], (inter_dim, latent_dim), latent_dim, inter_dim)
    p["dec_fc1_b"] = jnp.zeros((inter_dim,), jnp.float32)
    p["dec_fc2_w"] = xavier_uniform(ks[5], (enc_flat, inter_dim), inter_dim, enc_flat)
    p["dec_fc2_b"] = jnp.zeros((enc_flat,), jnp.float32)
    p["dec_w"] = 0.1 * jax.random.normal(ks[6], (chid, cin, 3, 3), jnp.float32)
    p["dec_b"] = jnp.zeros((cin,), jnp.float32)
    return p


if __name__ == "__main__":
    # Shapes consistent with the module:
    #   input (B=2, C=1, 16, 16); encoder Conv k=3 s=2 p=1 -> (2, 4, 8, 8)
    #   flat_dim = 1*16*16 = 256 = 4*8*8 (matches fc1 input as forward requires)
    B, Cin, H, W = 2, 1, 16, 16
    hidden_channels = [4]
    inter_dim, latent_dim = 32, 8
    chid = hidden_channels[0]
    enc_flat = Cin * H * W  # 256 == chid * (H//2) * (W//2)

    cfg = dict(cin=Cin, chid=chid, H=H, W=W, kernel=3, stride=2, padding=1,
               output_padding=1, inter_dim=inter_dim, latent_dim=latent_dim)

    key = jax.random.PRNGKey(0)
    k_par, k_x, k_eps = jax.random.split(key, 3)
    params = init_params(k_par, Cin, chid, inter_dim, latent_dim, enc_flat)
    pp = prepare_params(params, cfg)

    x = jax.random.normal(k_x, (B, Cin, H, W), jnp.float32)
    eps = jax.random.normal(k_eps, (B, latent_dim), jnp.float32)

    fwd = jax.jit(make_vae_forward(cfg))
    rec, mu, logvar, z = fwd(pp, x, eps)
    jax.block_until_ready(rec)

    assert rec.shape == x.shape, (rec.shape, x.shape)
    assert mu.shape == (B, latent_dim) and logvar.shape == (B, latent_dim)
    assert z.shape == (B, latent_dim)
    for t in (rec, mu, logvar, z):
        assert bool(jnp.all(jnp.isfinite(t)))

    # f32 reference check (bf16 MXU inputs -> small, tolerated numeric drift).
    rec_r, mu_r, lv_r, z_r = reference_forward(params, x, eps, cfg)
    for got, ref in ((rec, rec_r), (mu, mu_r), (logvar, lv_r), (z, z_r)):
        err = float(jnp.max(jnp.abs(got - ref)))
        assert bool(jnp.allclose(got, ref, rtol=5e-2, atol=5e-2)), err

    print("KERNEL_OK")
</pallas_src>

<mosaic_0001>
module attributes {stable_mosaic.version = 11 : i64} {
  func.func @_vae_fused_kernel(%arg0: i32, %arg1: memref<8x256xf32, #tpu.memory_space<vmem>>, %arg2: memref<8x128xf32, #tpu.memory_space<vmem>>, %arg3: memref<256x256xbf16, #tpu.memory_space<vmem>>, %arg4: memref<1x256xf32, #tpu.memory_space<vmem>>, %arg5: memref<256x128xbf16, #tpu.memory_space<vmem>>, %arg6: memref<1x128xf32, #tpu.memory_space<vmem>>, %arg7: memref<128x256xbf16, #tpu.memory_space<vmem>>, %arg8: memref<1x256xf32, #tpu.memory_space<vmem>>, %arg9: memref<128x128xbf16, #tpu.memory_space<vmem>>, %arg10: memref<1x128xf32, #tpu.memory_space<vmem>>, %arg11: memref<128x256xbf16, #tpu.memory_space<vmem>>, %arg12: memref<1x256xf32, #tpu.memory_space<vmem>>, %arg13: memref<256x256xbf16, #tpu.memory_space<vmem>>, %arg14: memref<1x256xf32, #tpu.memory_space<vmem>>, %arg15: memref<8x256xf32, #tpu.memory_space<vmem>>, %arg16: memref<8x128xf32, #tpu.memory_space<vmem>>, %arg17: memref<8x128xf32, #tpu.memory_space<vmem>>, %arg18: memref<8x128xf32, #tpu.memory_space<vmem>>) attributes {dimension_semantics = [#tpu.dimension_semantics<arbitrary>], iteration_bounds = array<i64: 1>, scalar_prefetch = 0 : i64, scratch_operands = 0 : i64, tpu.core_type = #tpu.core_type<tc>, window_params = [{pipeline_mode = #tpu.pipeline_mode<synchronous>, transform_indices = @transform_0, window_bounds = array<i64: 8, 256>}, {pipeline_mode = #tpu.pipeline_mode<synchronous>, transform_indices = @transform_1, window_bounds = array<i64: 8, 128>}, {pipeline_mode = #tpu.pipeline_mode<synchronous>, transform_indices = @transform_2, window_bounds = array<i64: 256, 256>}, {pipeline_mode = #tpu.pipeline_mode<synchronous>, transform_indices = @transform_3, window_bounds = array<i64: 1, 256>}, {pipeline_mode = #tpu.pipeline_mode<synchronous>, transform_indices = @transform_4, window_bounds = array<i64: 256, 128>}, {pipeline_mode = #tpu.pipeline_mode<synchronous>, transform_indices = @transform_5, window_bounds = array<i64: 1, 128>}, {pipeline_mode = #tpu.pipeline_mode<synchronous>, transform_indices = @transform_6, window_bounds = array<i64: 128, 256>}, {pipeline_mode = #tpu.pipeline_mode<synchronous>, transform_indices = @transform_7, window_bounds = array<i64: 1, 256>}, {pipeline_mode = #tpu.pipeline_mode<synchronous>, transform_indices = @transform_8, window_bounds = array<i64: 128, 128>}, {pipeline_mode = #tpu.pipeline_mode<synchronous>, transform_indices = @transform_9, window_bounds = array<i64: 1, 128>}, {pipeline_mode = #tpu.pipeline_mode<synchronous>, transform_indices = @transform_10, window_bounds = array<i64: 128, 256>}, {pipeline_mode = #tpu.pipeline_mode<synchronous>, transform_indices = @transform_11, window_bounds = array<i64: 1, 256>}, {pipeline_mode = #tpu.pipeline_mode<synchronous>, transform_indices = @transform_12, window_bounds = array<i64: 256, 256>}, {pipeline_mode = #tpu.pipeline_mode<synchronous>, transform_indices = @transform_13, window_bounds = array<i64: 1, 256>}, {pipeline_mode = #tpu.pipeline_mode<synchronous>, transform_indices = @transform_14, window_bounds = array<i64: 8, 256>}, {pipeline_mode = #tpu.pipeline_mode<synchronous>, transform_indices = @transform_15, window_bounds = array<i64: 8, 128>}, {pipeline_mode = #tpu.pipeline_mode<synchronous>, transform_indices = @transform_16, window_bounds = array<i64: 8, 128>}, {pipeline_mode = #tpu.pipeline_mode<synchronous>, transform_indices = @transform_17, window_bounds = array<i64: 8, 128>}]} {
    %c0 = arith.constant 0 : index
    %c0_0 = arith.constant 0 : index
    %0 = vector.load %arg1[%c0, %c0_0] : memref<8x256xf32, #tpu.memory_space<vmem>>, vector<8x256xf32>
    %1 = arith.truncf %0 : vector<8x256xf32> to vector<8x256xbf16>
    %c0_1 = arith.constant 0 : index
    %c0_2 = arith.constant 0 : index
    %2 = vector.load %arg3[%c0_1, %c0_2] : memref<256x256xbf16, #tpu.memory_space<vmem>>, vector<256x256xbf16>
    %cst = arith.constant dense<0.000000e+00> : vector<8x256xf32>
    %3 = tpu.matmul %1, %2, %cst {dimension_numbers = #tpu.dot_dimension_numbers<[1], [0], [0], [1], [0, 0, 1, 1], [], []>} : vector<8x256xbf16>, vector<256x256xbf16>, vector<8x256xf32> -> vector<8x256xf32>
    %c0_3 = arith.constant 0 : index
    %c0_4 = arith.constant 0 : index
    %4 = vector.load %arg4[%c0_3, %c0_4] : memref<1x256xf32, #tpu.memory_space<vmem>>, vector<1x256xf32>
    %5 = vector.broadcast %4 : vector<1x256xf32> to vector<8x256xf32>
    %6 = arith.addf %3, %5 : vector<8x256xf32>
    %cst_5 = arith.constant 0.000000e+00 : f32
    %7 = vector.broadcast %cst_5 : f32 to vector<8x256xf32>
    %8 = arith.maximumf %6, %7 : vector<8x256xf32>
    %9 = arith.truncf %8 : vector<8x256xf32> to vector<8x256xbf16>
    %c0_6 = arith.constant 0 : index
    %c0_7 = arith.constant 0 : index
    %10 = vector.load %arg5[%c0_6, %c0_7] : memref<256x128xbf16, #tpu.memory_space<vmem>>, vector<256x128xbf16>
    %cst_8 = arith.constant dense<0.000000e+00> : vector<8x128xf32>
    %11 = tpu.matmul %9, %10, %cst_8 {dimension_numbers = #tpu.dot_dimension_numbers<[1], [0], [0], [1], [0, 0, 1, 1], [], []>} : vector<8x256xbf16>, vector<256x128xbf16>, vector<8x128xf32> -> vector<8x128xf32>
    %c0_9 = arith.constant 0 : index
    %c0_10 = arith.constant 0 : index
    %12 = vector.load %arg6[%c0_9, %c0_10] : memref<1x128xf32, #tpu.memory_space<vmem>>, vector<1x128xf32>
    %13 = vector.broadcast %12 : vector<1x128xf32> to vector<8x128xf32>
    %14 = arith.addf %11, %13 : vector<8x128xf32>
    %cst_11 = arith.constant 0.000000e+00 : f32
    %15 = vector.broadcast %cst_11 : f32 to vector<8x128xf32>
    %16 = arith.maximumf %14, %15 : vector<8x128xf32>
    %17 = arith.truncf %16 : vector<8x128xf32> to vector<8x128xbf16>
    %c0_12 = arith.constant 0 : index
    %c0_13 = arith.constant 0 : index
    %18 = vector.load %arg7[%c0_12, %c0_13] : memref<128x256xbf16, #tpu.memory_space<vmem>>, vector<128x256xbf16>
    %cst_14 = arith.constant dense<0.000000e+00> : vector<8x256xf32>
    %19 = tpu.matmul %17, %18, %cst_14 {dimension_numbers = #tpu.dot_dimension_numbers<[1], [0], [0], [1], [0, 0, 1, 1], [], []>} : vector<8x128xbf16>, vector<128x256xbf16>, vector<8x256xf32> -> vector<8x256xf32>
    %c0_15 = arith.constant 0 : index
    %c0_16 = arith.constant 0 : index
    %20 = vector.load %arg8[%c0_15, %c0_16] : memref<1x256xf32, #tpu.memory_space<vmem>>, vector<1x256xf32>
    %21 = vector.broadcast %20 : vector<1x256xf32> to vector<8x256xf32>
    %22 = arith.addf %19, %21 : vector<8x256xf32>
    %23 = vector.extract_strided_slice %22 {offsets = [0, 0], sizes = [8, 128], strides = [1, 1]} : vector<8x256xf32> to vector<8x128xf32>
    %24 = vector.extract_strided_slice %22 {offsets = [0, 128], sizes = [8, 128], strides = [1, 1]} : vector<8x256xf32> to vector<8x128xf32>
    %c0_17 = arith.constant 0 : index
    %c0_18 = arith.constant 0 : index
    %25 = vector.load %arg2[%c0_17, %c0_18] : memref<8x128xf32, #tpu.memory_space<vmem>>, vector<8x128xf32>
    %cst_19 = arith.constant 5.000000e-01 : f32
    %26 = vector.broadcast %cst_19 : f32 to vector<8x128xf32>
    %27 = arith.mulf %26, %24 : vector<8x128xf32>
    %28 = math.exp %27 : vector<8x128xf32>
    %29 = arith.mulf %25, %28 : vector<8x128xf32>
    %30 = arith.addf %23, %29 : vector<8x128xf32>
    %c0_20 = arith.constant 0 : index
    %c0_21 = arith.constant 0 : index
    %31 = vector.load %arg16[%c0_20, %c0_21] : memref<8x128xf32, #tpu.memory_space<vmem>>, vector<8x128xf32>
    tpu.vector_store %arg16[%c0_20, %c0_21], %23 {strides = array<i32>} : memref<8x128xf32, #tpu.memory_space<vmem>>, vector<8x128xf32>,
    %c0_22 = arith.constant 0 : index
    %c0_23 = arith.constant 0 : index
    %32 = vector.load %arg17[%c0_22, %c0_23] : memref<8x128xf32, #tpu.memory_space<vmem>>, vector<8x128xf32>
    tpu.vector_store %arg17[%c0_22, %c0_23], %24 {strides = array<i32>} : memref<8x128xf32, #tpu.memory_space<vmem>>, vector<8x128xf32>,
    %c0_24 = arith.constant 0 : index
    %c0_25 = arith.constant 0 : index
    %33 = vector.load %arg18[%c0_24, %c0_25] : memref<8x128xf32, #tpu.memory_space<vmem>>, vector<8x128xf32>
    tpu.vector_store %arg18[%c0_24, %c0_25], %30 {strides = array<i32>} : memref<8x128xf32, #tpu.memory_space<vmem>>, vector<8x128xf32>,
    %34 = arith.truncf %30 : vector<8x128xf32> to vector<8x128xbf16>
    %c0_26 = arith.constant 0 : index
    %c0_27 = arith.constant 0 : index
    %35 = vector.load %arg9[%c0_26, %c0_27] : memref<128x128xbf16, #tpu.memory_space<vmem>>, vector<128x128xbf16>
    %cst_28 = arith.constant dense<0.000000e+00> : vector<8x128xf32>
    %36 = tpu.matmul %34, %35, %cst_28 {dimension_numbers = #tpu.dot_dimension_numbers<[1], [0], [0], [1], [0, 0, 1, 1], [], []>} : vector<8x128xbf16>, vector<128x128xbf16>, vector<8x128xf32> -> vector<8x128xf32>
    %c0_29 = arith.constant 0 : index
    %c0_30 = arith.constant 0 : index
    %37 = vector.load %arg10[%c0_29, %c0_30] : memref<1x128xf32, #tpu.memory_space<vmem>>, vector<1x128xf32>
    %38 = vector.broadcast %37 : vector<1x128xf32> to vector<8x128xf32>
    %39 = arith.addf %36, %38 : vector<8x128xf32>
    %cst_31 = arith.constant 0.000000e+00 : f32
    %40 = vector.broadcast %cst_31 : f32 to vector<8x128xf32>
    %41 = arith.maximumf %39, %40 : vector<8x128xf32>
    %42 = arith.truncf %41 : vector<8x128xf32> to vector<8x128xbf16>
    %c0_32 = arith.constant 0 : index
    %c0_33 = arith.constant 0 : index
    %43 = vector.load %arg11[%c0_32, %c0_33] : memref<128x256xbf16, #tpu.memory_space<vmem>>, vector<128x256xbf16>
    %cst_34 = arith.constant dense<0.000000e+00> : vector<8x256xf32>
    %44 = tpu.matmul %42, %43, %cst_34 {dimension_numbers = #tpu.dot_dimension_numbers<[1], [0], [0], [1], [0, 0, 1, 1], [], []>} : vector<8x128xbf16>, vector<128x256xbf16>, vector<8x256xf32> -> vector<8x256xf32>
    %c0_35 = arith.constant 0 : index
    %c0_36 = arith.constant 0 : index
    %45 = vector.load %arg12[%c0_35, %c0_36] : memref<1x256xf32, #tpu.memory_space<vmem>>, vector<1x256xf32>
    %46 = vector.broadcast %45 : vector<1x256xf32> to vector<8x256xf32>
    %47 = arith.addf %44, %46 : vector<8x256xf32>
    %48 = arith.truncf %47 : vector<8x256xf32> to vector<8x256xbf16>
    %c0_37 = arith.constant 0 : index
    %c0_38 = arith.constant 0 : index
    %49 = vector.load %arg13[%c0_37, %c0_38] : memref<256x256xbf16, #tpu.memory_space<vmem>>, vector<256x256xbf16>
    %cst_39 = arith.constant dense<0.000000e+00> : vector<8x256xf32>
    %50 = tpu.matmul %48, %49, %cst_39 {dimension_numbers = #tpu.dot_dimension_numbers<[1], [0], [0], [1], [0, 0, 1, 1], [], []>} : vector<8x256xbf16>, vector<256x256xbf16>, vector<8x256xf32> -> vector<8x256xf32>
    %c0_40 = arith.constant 0 : index
    %c0_41 = arith.constant 0 : index
    %51 = vector.load %arg14[%c0_40, %c0_41] : memref<1x256xf32, #tpu.memory_space<vmem>>, vector<1x256xf32>
    %52 = vector.broadcast %51 : vector<1x256xf32> to vector<8x256xf32>
    %53 = arith.addf %50, %52 : vector<8x256xf32>
    %c0_42 = arith.constant 0 : index
    %c0_43 = arith.constant 0 : index
    %54 = vector.load %arg15[%c0_42, %c0_43] : memref<8x256xf32, #tpu.memory_space<vmem>>, vector<8x256xf32>
    tpu.vector_store %arg15[%c0_42, %c0_43], %53 {strides = array<i32>} : memref<8x256xf32, #tpu.memory_space<vmem>>, vector<8x256xf32>,
    return
  }
  func.func @transform_0(%arg0: i32) -> (i32, i32) {
    %c0_i32 = arith.constant 0 : i32
    %c0_i32_0 = arith.constant 0 : i32
    %c0_i32_1 = arith.constant 0 : i32
    return %c0_i32, %c0_i32_0 : i32, i32
  }
  func.func @transform_1(%arg0: i32) -> (i32, i32) {
    %c0_i32 = arith.constant 0 : i32
    %c0_i32_0 = arith.constant 0 : i32
    %c0_i32_1 = arith.constant 0 : i32
    return %c0_i32, %c0_i32_0 : i32, i32
  }
  func.func @transform_2(%arg0: i32) -> (i32, i32) {
    %c0_i32 = arith.constant 0 : i32
    %c0_i32_0 = arith.constant 0 : i32
    %c0_i32_1 = arith.constant 0 : i32
    return %c0_i32, %c0_i32_0 : i32, i32
  }
  func.func @transform_3(%arg0: i32) -> (i32, i32) {
    %c0_i32 = arith.constant 0 : i32
    %c0_i32_0 = arith.constant 0 : i32
    %c0_i32_1 = arith.constant 0 : i32
    return %c0_i32, %c0_i32_0 : i32, i32
  }
  func.func @transform_4(%arg0: i32) -> (i32, i32) {
    %c0_i32 = arith.constant 0 : i32
    %c0_i32_0 = arith.constant 0 : i32
    %c0_i32_1 = arith.constant 0 : i32
    return %c0_i32, %c0_i32_0 : i32, i32
  }
  func.func @transform_5(%arg0: i32) -> (i32, i32) {
    %c0_i32 = arith.constant 0 : i32
    %c0_i32_0 = arith.constant 0 : i32
    %c0_i32_1 = arith.constant 0 : i32
    return %c0_i32, %c0_i32_0 : i32, i32
  }
  func.func @transform_6(%arg0: i32) -> (i32, i32) {
    %c0_i32 = arith.constant 0 : i32
    %c0_i32_0 = arith.constant 0 : i32
    %c0_i32_1 = arith.constant 0 : i32
    return %c0_i32, %c0_i32_0 : i32, i32
  }
  func.func @transform_7(%arg0: i32) -> (i32, i32) {
    %c0_i32 = arith.constant 0 : i32
    %c0_i32_0 = arith.constant 0 : i32
    %c0_i32_1 = arith.constant 0 : i32
    return %c0_i32, %c0_i32_0 : i32, i32
  }
  func.func @transform_8(%arg0: i32) -> (i32, i32) {
    %c0_i32 = arith.constant 0 : i32
    %c0_i32_0 = arith.constant 0 : i32
    %c0_i32_1 = arith.constant 0 : i32
    return %c0_i32, %c0_i32_0 : i32, i32
  }
  func.func @transform_9(%arg0: i32) -> (i32, i32) {
    %c0_i32 = arith.constant 0 : i32
    %c0_i32_0 = arith.constant 0 : i32
    %c0_i32_1 = arith.constant 0 : i32
    return %c0_i32, %c0_i32_0 : i32, i32
  }
  func.func @transform_10(%arg0: i32) -> (i32, i32) {
    %c0_i32 = arith.constant 0 : i32
    %c0_i32_0 = arith.constant 0 : i32
    %c0_i32_1 = arith.constant 0 : i32
    return %c0_i32, %c0_i32_0 : i32, i32
  }
  func.func @transform_11(%arg0: i32) -> (i32, i32) {
    %c0_i32 = arith.constant 0 : i32
    %c0_i32_0 = arith.constant 0 : i32
    %c0_i32_1 = arith.constant 0 : i32
    return %c0_i32, %c0_i32_0 : i32, i32
  }
  func.func @transform_12(%arg0: i32) -> (i32, i32) {
    %c0_i32 = arith.constant 0 : i32
    %c0_i32_0 = arith.constant 0 : i32
    %c0_i32_1 = arith.constant 0 : i32
    return %c0_i32, %c0_i32_0 : i32, i32
  }
  func.func @transform_13(%arg0: i32) -> (i32, i32) {
    %c0_i32 = arith.constant 0 : i32
    %c0_i32_0 = arith.constant 0 : i32
    %c0_i32_1 = arith.constant 0 : i32
    return %c0_i32, %c0_i32_0 : i32, i32
  }
  func.func @transform_14(%arg0: i32) -> (i32, i32) {
    %c0_i32 = arith.constant 0 : i32
    %c0_i32_0 = arith.constant 0 : i32
    %c0_i32_1 = arith.constant 0 : i32
    return %c0_i32, %c0_i32_0 : i32, i32
  }
  func.func @transform_15(%arg0: i32) -> (i32, i32) {
    %c0_i32 = arith.constant 0 : i32
    %c0_i32_0 = arith.constant 0 : i32
    %c0_i32_1 = arith.constant 0 : i32
    return %c0_i32, %c0_i32_0 : i32, i32
  }
  func.func @transform_16(%arg0: i32) -> (i32, i32) {
    %c0_i32 = arith.constant 0 : i32
    %c0_i32_0 = arith.constant 0 : i32
    %c0_i32_1 = arith.constant 0 : i32
    return %c0_i32, %c0_i32_0 : i32, i32
  }
  func.func @transform_17(%arg0: i32) -> (i32, i32) {
    %c0_i32 = arith.constant 0 : i32
    %c0_i32_0 = arith.constant 0 : i32
    %c0_i32_1 = arith.constant 0 : i32
    return %c0_i32, %c0_i32_0 : i32, i32
  }
}

</mosaic_0001>

<llo_original>
// kernel: forward.1
$region0: #{forward.1}
  #allocation0 [shape = 'u32[]', space=smem, size = 0x4, offset = 0x4, fixed_abs, tag = 'smem constant byte address 0x4 - core index']
  #allocation1 [shape = 'u32[72,128]{1,0:T(1,128)}', space=vmem, size = 0x9000, scoped, tag = 'internal scratch']
  %s0 = inlined_call_operand.vmem [shape: f32[8,256], index: 0, kind: input, shape index: {}]
  %s1 = inlined_call_operand.vmem [shape: f32[8,128], index: 1, kind: input, shape index: {}]
  %s2 = inlined_call_operand.hbm [shape: bf16[256,256], index: 2, kind: input, shape index: {}]
  %s3 = inlined_call_operand.vmem [shape: f32[1,256], index: 3, kind: input, shape index: {}]
  %s4 = inlined_call_operand.hbm [shape: bf16[256,128], index: 4, kind: input, shape index: {}]
  %s5 = inlined_call_operand.vmem [shape: f32[1,128], index: 5, kind: input, shape index: {}]
  %s6 = inlined_call_operand.hbm [shape: bf16[128,256], index: 6, kind: input, shape index: {}]
  %s7 = inlined_call_operand.vmem [shape: f32[1,256], index: 7, kind: input, shape index: {}]
  %s8 = inlined_call_operand.vmem [shape: bf16[128,128], index: 8, kind: input, shape index: {}]
  %s9 = inlined_call_operand.hbm [shape: f32[1,128], index: 9, kind: input, shape index: {}]
  %s10 = inlined_call_operand.hbm [shape: bf16[128,256], index: 10, kind: input, shape index: {}]
  %s11 = inlined_call_operand.vmem [shape: f32[1,256], index: 11, kind: input, shape index: {}]
  %s12 = inlined_call_operand.hbm [shape: bf16[256,256], index: 12, kind: input, shape index: {}]
  %s13 = inlined_call_operand.vmem [shape: f32[1,256], index: 13, kind: input, shape index: {}]
  %s14 = inlined_call_operand.vmem [shape: f32[8,256], index: 14, kind: output, shape index: {0}]
  %s15 = inlined_call_operand.vmem [shape: f32[8,128], index: 15, kind: output, shape index: {1}]
  %s16 = inlined_call_operand.vmem [shape: f32[8,128], index: 16, kind: output, shape index: {2}]
  %s17 = inlined_call_operand.vmem [shape: f32[8,128], index: 17, kind: output, shape index: {3}]
  %18 = xla_tuple %s14, %s15, %s16, %s17
  %s19 = sld [smem:[#allocation0]]
  $region114: #{forward.1} parent=0
    _
  %s21 = ssub.s32 1, %s19
  %s22 = scalar_select 0, %s21, %s19
  $region1: #{forward.1} parent=0
    #allocation2 [shape = 'u8[131072]{0}', space=vmem, size = 0x20000, scoped, tag = 'input window, operand 2, single buffered']
    #allocation3 [shape = 's32[1]{0}', space=sflag, size = 0x4, scoped, tag = 'scoped memory for forward.1']
    #allocation4 [shape = 'u8[65536]{0}', space=vmem, size = 0x10000, scoped, tag = 'input window, operand 4, single buffered']
    #allocation5 [shape = 's32[1]{0}', space=sflag, size = 0x4, scoped, tag = 'scoped memory for forward.1']
    #allocation6 [shape = 'u8[65536]{0}', space=vmem, size = 0x10000, scoped, tag = 'input window, operand 6, single buffered']
    #allocation7 [shape = 'u8[512]{0}', space=vmem, size = 0x400, scoped, tag = 'input window, operand 9, single buffered']
    #allocation8 [shape = 's32[1]{0}', space=sflag, size = 0x4, scoped, tag = 'scoped memory for forward.1']
    #allocation9 [shape = 'u8[65536]{0}', space=vmem, size = 0x10000, scoped, tag = 'input window, operand 10, single buffered']
    #allocation10 [shape = 'u8[131072]{0}', space=vmem, size = 0x20000, scoped, tag = 'input window, operand 12, single buffered']
    #allocation11 [shape = 's32[1]{0}', space=sflag, size = 0x4, scoped, tag = 'scoped memory for forward.1']
    %23 = vsyncpa [#allocation3], 0
    %24 = vsyncpa [#allocation5], 0
    %25 = vsyncpa [#allocation8], 0
    %26 = vsyncpa [#allocation11], 0
    // Predicated region
    $region2: #{forward.1} parent=1 // pred_check
      _
    $region3: #{forward.1} parent=1 // pred_check_branch
      %28 = sbr.rel (0) target = $region5
    $region4: #{forward.1} parent=1 // pred_region
      _
    $region5: #{forward.1} parent=1 // pred_fallthru
      _
    // Predicated region
    $region6: #{forward.1} parent=1 // pred_check
      _
    $region7: #{forward.1} parent=1 // pred_check_branch
      %30 = sbr.rel (0) target = $region9
    $region8: #{forward.1} parent=1 // pred_region
      _
    $region9: #{forward.1} parent=1 // pred_fallthru
      _
    // Predicated region
    $region10: #{forward.1} parent=1 // pred_check
      _
    $region11: #{forward.1} parent=1 // pred_check_branch
      %32 = sbr.rel (0) target = $region13
    $region12: #{forward.1} parent=1 // pred_region
      %34 = vsyncadd [#allocation3], 0
      %s35 = sshll.u32 %s2, 4
      %s36 = int_to_ptr.hbm [resolvable:$true] %s35
      %s37 = sshll.u32 [#allocation2], 4
      %s38 = int_to_ptr.vmem [resolvable:$true] %s37
      %43 = dma.hbm_to_vmem [thread:$0]  %s36, 4096, %s38, [#allocation3], 128, 128, 8
    $region13: #{forward.1} parent=1 // pred_fallthru
      _
    // Predicated region
    $region14: #{forward.1} parent=1 // pred_check
      _
    $region15: #{forward.1} parent=1 // pred_check_branch
      %45 = sbr.rel (0) target = $region17
    $region16: #{forward.1} parent=1 // pred_region
      _
    $region17: #{forward.1} parent=1 // pred_fallthru
      _
    // Predicated region
    $region18: #{forward.1} parent=1 // pred_check
      _
    $region19: #{forward.1} parent=1 // pred_check_branch
      %47 = sbr.rel (0) target = $region21
    $region20: #{forward.1} parent=1 // pred_region
      %49 = vsyncadd [#allocation5], 0
      %s50 = sshll.u32 %s4, 4
      %s51 = int_to_ptr.hbm [resolvable:$true] %s50
      %s52 = sshll.u32 [#allocation4], 4
      %s53 = int_to_ptr.vmem [resolvable:$true] %s52
      %58 = dma.hbm_to_vmem [thread:$0]  %s51, 2048, %s53, [#allocation5], 64, 64, 4
    $region21: #{forward.1} parent=1 // pred_fallthru
      _
    // Predicated region
    $region22: #{forward.1} parent=1 // pred_check
      _
    $region23: #{forward.1} parent=1 // pred_check_branch
      %60 = sbr.rel (0) target = $region25
    $region24: #{forward.1} parent=1 // pred_region
      _
    $region25: #{forward.1} parent=1 // pred_fallthru
      _
    // Predicated region
    $region26: #{forward.1} parent=1 // pred_check
      _
    $region27: #{forward.1} parent=1 // pred_check_branch
      %62 = sbr.rel (0) target = $region29
    $region28: #{forward.1} parent=1 // pred_region
      %64 = vsyncadd [#allocation5], 0
      %s65 = sshll.u32 %s6, 4
      %s66 = int_to_ptr.hbm [resolvable:$true] %s65
      %s67 = sshll.u32 [#allocation6], 4
      %s68 = int_to_ptr.vmem [resolvable:$true] %s67
      %73 = dma.hbm_to_vmem [thread:$0]  %s66, 2048, %s68, [#allocation5], 128, 128, 8
    $region29: #{forward.1} parent=1 // pred_fallthru
      _
    // Predicated region
    $region30: #{forward.1} parent=1 // pred_check
      _
    $region31: #{forward.1} parent=1 // pred_check_branch
      %75 = sbr.rel (0) target = $region33
    $region32: #{forward.1} parent=1 // pred_region
      _
    $region33: #{forward.1} parent=1 // pred_fallthru
      _
    // Predicated region
    $region34: #{forward.1} parent=1 // pred_check
      _
    $region35: #{forward.1} parent=1 // pred_check_branch
      %77 = sbr.rel (0) target = $region37
    $region36: #{forward.1} parent=1 // pred_region
      _
    $region37: #{forward.1} parent=1 // pred_fallthru
      _
    // Predicated region
    $region38: #{forward.1} parent=1 // pred_check
      _
    $region39: #{forward.1} parent=1 // pred_check_branch
      %79 = sbr.rel (0) target = $region41
    $region40: #{forward.1} parent=1 // pred_region
      %81 = vsyncadd [#allocation8], 0
      %s83 = sshll.u32 %s9, 4
      %s84 = int_to_ptr.hbm [resolvable:$true] %s83
      %s85 = sshll.u32 [#allocation7], 4
      %s86 = int_to_ptr.vmem [resolvable:$true] %s85
      %88 = dma.hbm_to_vmem [thread:$0]  %s84, 16, %s86, [#allocation8]
    $region41: #{forward.1} parent=1 // pred_fallthru
      _
    // Predicated region
    $region42: #{forward.1} parent=1 // pred_check
      _
    $region43: #{forward.1} parent=1 // pred_check_branch
      %90 = sbr.rel (0) target = $region45
    $region44: #{forward.1} parent=1 // pred_region
      %92 = vsyncadd [#allocation8], 0
      %s93 = sshll.u32 %s10, 4
      %s94 = int_to_ptr.hbm [resolvable:$true] %s93
      %s95 = sshll.u32 [#allocation9], 4
      %s96 = int_to_ptr.vmem [resolvable:$true] %s95
      %101 = dma.hbm_to_vmem [thread:$0]  %s94, 2048, %s96, [#allocation8], 128, 128, 8
    $region45: #{forward.1} parent=1 // pred_fallthru
      _
    // Predicated region
    $region46: #{forward.1} parent=1 // pred_check
      _
    $region47: #{forward.1} parent=1 // pred_check_branch
      %103 = sbr.rel (0) target = $region49
    $region48: #{forward.1} parent=1 // pred_region
      _
    $region49: #{forward.1} parent=1 // pred_fallthru
      _
    // Predicated region
    $region50: #{forward.1} parent=1 // pred_check
      _
    $region51: #{forward.1} parent=1 // pred_check_branch
      %105 = sbr.rel (0) target = $region53
    $region52: #{forward.1} parent=1 // pred_region
      %107 = vsyncadd [#allocation11], 0
      %s108 = sshll.u32 %s12, 4
      %s109 = int_to_ptr.hbm [resolvable:$true] %s108
      %s110 = sshll.u32 [#allocation10], 4
      %s111 = int_to_ptr.vmem [resolvable:$true] %s110
      %116 = dma.hbm_to_vmem [thread:$0]  %s109, 4096, %s111, [#allocation11], 128, 128, 8
    $region53: #{forward.1} parent=1 // pred_fallthru
      _
    // Predicated region
    $region54: #{forward.1} parent=1 // pred_check
      _
    $region55: #{forward.1} parent=1 // pred_check_branch
      %118 = sbr.rel (0) target = $region57
    $region56: #{forward.1} parent=1 // pred_region
      _
    $region57: #{forward.1} parent=1 // pred_fallthru
      _
    // Predicated region
    $region58: #{forward.1} parent=1 // pred_check
      _
    $region59: #{forward.1} parent=1 // pred_check_branch
      %120 = sbr.rel (0) target = $region61
    $region60: #{forward.1} parent=1 // pred_region
      %122 = dma.done [#allocation3], 4096
    $region61: #{forward.1} parent=1 // pred_fallthru
      _
    // Predicated region
    $region62: #{forward.1} parent=1 // pred_check
      _
    $region63: #{forward.1} parent=1 // pred_check_branch
      %124 = sbr.rel (0) target = $region65
    $region64: #{forward.1} parent=1 // pred_region
      %126 = dma.done [#allocation5], 2048
    $region65: #{forward.1} parent=1 // pred_fallthru
      _
    // Predicated region
    $region66: #{forward.1} parent=1 // pred_check
      _
    $region67: #{forward.1} parent=1 // pred_check_branch
      %128 = sbr.rel (0) target = $region69
    $region68: #{forward.1} parent=1 // pred_region
      %130 = dma.done [#allocation5], 2048
    $region69: #{forward.1} parent=1 // pred_fallthru
      _
    // Predicated region
    $region70: #{forward.1} parent=1 // pred_check
      _
    $region71: #{forward.1} parent=1 // pred_check_branch
      %132 = sbr.rel (0) target = $region73
    $region72: #{forward.1} parent=1 // pred_region
      %134 = dma.done [#allocation8], 16
    $region73: #{forward.1} parent=1 // pred_fallthru
      _
    // Predicated region
    $region74: #{forward.1} parent=1 // pred_check
      _
    $region75: #{forward.1} parent=1 // pred_check_branch
      %136 = sbr.rel (0) target = $region77
    $region76: #{forward.1} parent=1 // pred_region
      %138 = dma.done [#allocation8], 2048
    $region77: #{forward.1} parent=1 // pred_fallthru
      _
    // Predicated region
    $region78: #{forward.1} parent=1 // pred_check
      _
    $region79: #{forward.1} parent=1 // pred_check_branch
      %140 = sbr.rel (0) target = $region81
    $region80: #{forward.1} parent=1 // pred_region
      %142 = dma.done [#allocation11], 4096
    $region81: #{forward.1} parent=1 // pred_fallthru
      _
    %v143 = vld [vmem:[%s0] sm:$0xff]
    %v144 = vld [vmem:[%s0 + $0x8] sm:$0xff]
    %v145 = vpack.c.bf16 %v143, %v143
    %v146 = vpack.c.bf16 %v144, %v144
    %v147 = vld [vmem:[#allocation2] sm:$0xff]
    %v148 = vld [vmem:[#allocation2 + $0x8] sm:$0xff]
    %v149 = vld [vmem:[#allocation2 + $0x10] sm:$0xff]
    %v150 = vld [vmem:[#allocation2 + $0x18] sm:$0xff]
    %v151 = vld [vmem:[#allocation2 + $0x20] sm:$0xff]
    %v152 = vld [vmem:[#allocation2 + $0x28] sm:$0xff]
    %v153 = vld [vmem:[#allocation2 + $0x30] sm:$0xff]
    %v154 = vld [vmem:[#allocation2 + $0x38] sm:$0xff]
    %v155 = vld [vmem:[#allocation2 + $0x40] sm:$0xff]
    %v156 = vld [vmem:[#allocation2 + $0x48] sm:$0xff]
    %v157 = vld [vmem:[#allocation2 + $0x50] sm:$0xff]
    %v158 = vld [vmem:[#allocation2 + $0x58] sm:$0xff]
    %v159 = vld [vmem:[#allocation2 + $0x60] sm:$0xff]
    %v160 = vld [vmem:[#allocation2 + $0x68] sm:$0xff]
    %v161 = vld [vmem:[#allocation2 + $0x70] sm:$0xff]
    %v162 = vld [vmem:[#allocation2 + $0x78] sm:$0xff]
    %v163 = vld [vmem:[#allocation2 + $0x80] sm:$0xff]
    %v164 = vld [vmem:[#allocation2 + $0x88] sm:$0xff]
    %v165 = vld [vmem:[#allocation2 + $0x90] sm:$0xff]
    %v166 = vld [vmem:[#allocation2 + $0x98] sm:$0xff]
    %v167 = vld [vmem:[#allocation2 + $0xa0] sm:$0xff]
    %v168 = vld [vmem:[#allocation2 + $0xa8] sm:$0xff]
    %v169 = vld [vmem:[#allocation2 + $0xb0] sm:$0xff]
    %v170 = vld [vmem:[#allocation2 + $0xb8] sm:$0xff]
    %v171 = vld [vmem:[#allocation2 + $0xc0] sm:$0xff]
    %v172 = vld [vmem:[#allocation2 + $0xc8] sm:$0xff]
    %v173 = vld [vmem:[#allocation2 + $0xd0] sm:$0xff]
    %v174 = vld [vmem:[#allocation2 + $0xd8] sm:$0xff]
    %v175 = vld [vmem:[#allocation2 + $0xe0] sm:$0xff]
    %v176 = vld [vmem:[#allocation2 + $0xe8] sm:$0xff]
    %v177 = vld [vmem:[#allocation2 + $0xf0] sm:$0xff]
    %v178 = vld [vmem:[#allocation2 + $0xf8] sm:$0xff]
    %v179 = vld [vmem:[%s3] sm:$0x3]
    %v181 = vperm.slane %v179, 0
    %v182 = vperm.slane %v179, 1
    %v217 = vunpack.c.l.b16 %v147
    %v218 = vunpack.c.h.b16 %v147
    %v219 = vunpack.c.l.b16 %v148
    %v220 = vunpack.c.h.b16 %v148
    %v221 = vunpack.c.l.b16 %v149
    %v222 = vunpack.c.h.b16 %v149
    %v223 = vunpack.c.l.b16 %v150
    %v224 = vunpack.c.h.b16 %v150
    %v225 = vunpack.c.l.b16 %v151
    %v226 = vunpack.c.h.b16 %v151
    %v227 = vunpack.c.l.b16 %v152
    %v228 = vunpack.c.h.b16 %v152
    %v229 = vunpack.c.l.b16 %v153
    %v230 = vunpack.c.h.b16 %v153
    %v231 = vunpack.c.l.b16 %v154
    %v232 = vunpack.c.h.b16 %v154
    %v233 = vunpack.c.l.b16 %v155
    %v234 = vunpack.c.h.b16 %v155
    %v235 = vunpack.c.l.b16 %v156
    %v236 = vunpack.c.h.b16 %v156
    %v237 = vunpack.c.l.b16 %v157
    %v238 = vunpack.c.h.b16 %v157
    %v239 = vunpack.c.l.b16 %v158
    %v240 = vunpack.c.h.b16 %v158
    %v241 = vunpack.c.l.b16 %v159
    %v242 = vunpack.c.h.b16 %v159
    %v243 = vunpack.c.l.b16 %v160
    %v244 = vunpack.c.h.b16 %v160
    %v245 = vunpack.c.l.b16 %v161
    %v246 = vunpack.c.h.b16 %v161
    %v247 = vunpack.c.l.b16 %v162
    %v248 = vunpack.c.h.b16 %v162
    %v249 = vunpack.c.l.b16 %v163
    %v250 = vunpack.c.h.b16 %v163
    %v251 = vunpack.c.l.b16 %v164
    %v252 = vunpack.c.h.b16 %v164
    %v253 = vunpack.c.l.b16 %v165
    %v254 = vunpack.c.h.b16 %v165
    %v255 = vunpack.c.l.b16 %v166
    %v256 = vunpack.c.h.b16 %v166
    %v257 = vunpack.c.l.b16 %v167
    %v258 = vunpack.c.h.b16 %v167
    %v259 = vunpack.c.l.b16 %v168
    %v260 = vunpack.c.h.b16 %v168
    %v261 = vunpack.c.l.b16 %v169
    %v262 = vunpack.c.h.b16 %v169
    %v263 = vunpack.c.l.b16 %v170
    %v264 = vunpack.c.h.b16 %v170
    %v265 = vunpack.c.l.b16 %v171
    %v266 = vunpack.c.h.b16 %v171
    %v267 = vunpack.c.l.b16 %v172
    %v268 = vunpack.c.h.b16 %v172
    %v269 = vunpack.c.l.b16 %v173
    %v270 = vunpack.c.h.b16 %v173
    %v271 = vunpack.c.l.b16 %v174
    %v272 = vunpack.c.h.b16 %v174
    %v273 = vunpack.c.l.b16 %v175
    %v274 = vunpack.c.h.b16 %v175
    %v275 = vunpack.c.l.b16 %v176
    %v276 = vunpack.c.h.b16 %v176
    %v277 = vunpack.c.l.b16 %v177
    %v278 = vunpack.c.h.b16 %v177
    %v279 = vunpack.c.l.b16 %v178
    %v280 = vunpack.c.h.b16 %v178
    %v281 = vpack.c.b16 %v219, %v217
    %v282 = vpack.c.b16 %v220, %v218
    %v283 = vpack.c.b16 %v223, %v221
    %v284 = vpack.c.b16 %v224, %v222
    %v285 = vpack.c.b16 %v227, %v225
    %v286 = vpack.c.b16 %v228, %v226
    %v287 = vpack.c.b16 %v231, %v229
    %v288 = vpack.c.b16 %v232, %v230
    %v289 = vpack.c.b16 %v235, %v233
    %v290 = vpack.c.b16 %v236, %v234
    %v291 = vpack.c.b16 %v239, %v237
    %v292 = vpack.c.b16 %v240, %v238
    %v293 = vpack.c.b16 %v243, %v241
    %v294 = vpack.c.b16 %v244, %v242
    %v295 = vpack.c.b16 %v247, %v245
    %v296 = vpack.c.b16 %v248, %v246
    %v297 = vpack.c.b16 %v251, %v249
    %v298 = vpack.c.b16 %v252, %v250
    %v299 = vpack.c.b16 %v255, %v253
    %v300 = vpack.c.b16 %v256, %v254
    %v301 = vpack.c.b16 %v259, %v257
    %v302 = vpack.c.b16 %v260, %v258
    %v303 = vpack.c.b16 %v263, %v261
    %v304 = vpack.c.b16 %v264, %v262
    %v305 = vpack.c.b16 %v267, %v265
    %v306 = vpack.c.b16 %v268, %v266
    %v307 = vpack.c.b16 %v271, %v269
    %v308 = vpack.c.b16 %v272, %v270
    %v309 = vpack.c.b16 %v275, %v273
    %v310 = vpack.c.b16 %v276, %v274
    %v311 = vpack.c.b16 %v279, %v277
    %v312 = vpack.c.b16 %v280, %v278
    %345 = vmatpush.bf16.msra.mxu0 %v295
    %346 = vmatpush.bf16.msra.mxu0 %v293
    %347 = vmatpush.bf16.msra.mxu0 %v291
    %348 = vmatpush.bf16.msra.mxu0 %v289
    %349 = vmatpush.bf16.msra.mxu0 %v287
    %350 = vmatpush.bf16.msra.mxu0 %v285
    %351 = vmatpush.bf16.msra.mxu0 %v283
    %352 = vmatpush.bf16.msra.mxu0 %v281
    %353 = vmatmul.bf16.gmra.mxu0 %v145
    %v354 = vpop.f32.mrf.mxu0
    %v355 = vadd.f32 %v181, %v354
    %v356 = vpop.f32.mrf.mxu0
    %357 = vdwg.mxu0
    %358 = vmatpush.bf16.msra.mxu0 %v311
    %359 = vmatpush.bf16.msra.mxu0 %v309
    %360 = vmatpush.bf16.msra.mxu0 %v307
    %361 = vmatpush.bf16.msra.mxu0 %v305
    %362 = vmatpush.bf16.msra.mxu0 %v303
    %363 = vmatpush.bf16.msra.mxu0 %v301
    %364 = vmatpush.bf16.msra.mxu0 %v299
    %365 = vmatpush.bf16.msra.mxu0 %v297
    %366 = vmatmul.bf16.gmra.mxu0 %v146
    %v367 = vpop.f32.mrf.mxu0
    %v368 = vadd.f32 %v355, %v367
    %v369 = vpop.f32.mrf.mxu0
    %370 = vdwg.mxu0
    %371 = vmatpush.bf16.msra.mxu0 %v296
    %372 = vmatpush.bf16.msra.mxu0 %v294
    %373 = vmatpush.bf16.msra.mxu0 %v292
    %374 = vmatpush.bf16.msra.mxu0 %v290
    %375 = vmatpush.bf16.msra.mxu0 %v288
    %376 = vmatpush.bf16.msra.mxu0 %v286
    %377 = vmatpush.bf16.msra.mxu0 %v284
    %378 = vmatpush.bf16.msra.mxu0 %v282
    %379 = vmatmul.bf16.gmra.mxu0 %v145
    %v380 = vpop.f32.mrf.mxu0
    %v381 = vadd.f32 %v182, %v380
    %v382 = vpop.f32.mrf.mxu0
    %383 = vdwg.mxu0
    %384 = vmatpush.bf16.msra.mxu0 %v312
    %385 = vmatpush.bf16.msra.mxu0 %v310
    %386 = vmatpush.bf16.msra.mxu0 %v308
    %387 = vmatpush.bf16.msra.mxu0 %v306
    %388 = vmatpush.bf16.msra.mxu0 %v304
    %389 = vmatpush.bf16.msra.mxu0 %v302
    %390 = vmatpush.bf16.msra.mxu0 %v300
    %391 = vmatpush.bf16.msra.mxu0 %v298
    %392 = vmatmul.bf16.gmra.mxu0 %v146
    %v393 = vpop.f32.mrf.mxu0
    %v394 = vadd.f32 %v381, %v393
    %v395 = vpop.f32.mrf.mxu0
    %396 = vdwg.mxu0
    %v397 = vmax.f32 %v368, 0.0
    %v398 = vmax.f32 %v394, 0.0
    %v399 = vpack.c.bf16 %v397, %v397
    %v400 = vpack.c.bf16 %v398, %v398
    %v401 = vld [vmem:[#allocation4] sm:$0xf]
    %v402 = vld [vmem:[#allocation4 + $0x4] sm:$0xf]
    %v403 = vld [vmem:[#allocation4 + $0x8] sm:$0xf]
    %v404 = vld [vmem:[#allocation4 + $0xc] sm:$0xf]
    %v405 = vld [vmem:[#allocation4 + $0x10] sm:$0xf]
    %v406 = vld [vmem:[#allocation4 + $0x14] sm:$0xf]
    %v407 = vld [vmem:[#allocation4 + $0x18] sm:$0xf]
    %v408 = vld [vmem:[#allocation4 + $0x1c] sm:$0xf]
    %v409 = vld [vmem:[#allocation4 + $0x20] sm:$0xf]
    %v410 = vld [vmem:[#allocation4 + $0x24] sm:$0xf]
    %v411 = vld [vmem:[#allocation4 + $0x28] sm:$0xf]
    %v412 = vld [vmem:[#allocation4 + $0x2c] sm:$0xf]
    %v413 = vld [vmem:[#allocation4 + $0x30] sm:$0xf]
    %v414 = vld [vmem:[#allocation4 + $0x34] sm:$0xf]
    %v415 = vld [vmem:[#allocation4 + $0x38] sm:$0xf]
    %v416 = vld [vmem:[#allocation4 + $0x3c] sm:$0xf]
    %v417 = vld [vmem:[#allocation4 + $0x40] sm:$0xf]
    %v418 = vld [vmem:[#allocation4 + $0x44] sm:$0xf]
    %v419 = vld [vmem:[#allocation4 + $0x48] sm:$0xf]
    %v420 = vld [vmem:[#allocation4 + $0x4c] sm:$0xf]
    %v421 = vld [vmem:[#allocation4 + $0x50] sm:$0xf]
    %v422 = vld [vmem:[#allocation4 + $0x54] sm:$0xf]
    %v423 = vld [vmem:[#allocation4 + $0x58] sm:$0xf]
    %v424 = vld [vmem:[#allocation4 + $0x5c] sm:$0xf]
    %v425 = vld [vmem:[#allocation4 + $0x60] sm:$0xf]
    %v426 = vld [vmem:[#allocation4 + $0x64] sm:$0xf]
    %v427 = vld [vmem:[#allocation4 + $0x68] sm:$0xf]
    %v428 = vld [vmem:[#allocation4 + $0x6c] sm:$0xf]
    %v429 = vld [vmem:[#allocation4 + $0x70] sm:$0xf]
    %v430 = vld [vmem:[#allocation4 + $0x74] sm:$0xf]
    %v431 = vld [vmem:[#allocation4 + $0x78] sm:$0xf]
    %v432 = vld [vmem:[#allocation4 + $0x7c] sm:$0xf]
    %v433 = vld [vmem:[%s5] sm:$0x1]
    %v435 = vperm.slane %v433, 0
    %v469 = vunpack.c.l.b16 %v401
    %v470 = vunpack.c.l.b16 %v402
    %v471 = vunpack.c.l.b16 %v403
    %v472 = vunpack.c.l.b16 %v404
    %v473 = vunpack.c.l.b16 %v405
    %v474 = vunpack.c.l.b16 %v406
    %v475 = vunpack.c.l.b16 %v407
    %v476 = vunpack.c.l.b16 %v408
    %v477 = vunpack.c.l.b16 %v409
    %v478 = vunpack.c.l.b16 %v410
    %v479 = vunpack.c.l.b16 %v411
    %v480 = vunpack.c.l.b16 %v412
    %v481 = vunpack.c.l.b16 %v413
    %v482 = vunpack.c.l.b16 %v414
    %v483 = vunpack.c.l.b16 %v415
    %v484 = vunpack.c.l.b16 %v416
    %v485 = vunpack.c.l.b16 %v417
    %v486 = vunpack.c.l.b16 %v418
    %v487 = vunpack.c.l.b16 %v419
    %v488 = vunpack.c.l.b16 %v420
    %v489 = vunpack.c.l.b16 %v421
    %v490 = vunpack.c.l.b16 %v422
    %v491 = vunpack.c.l.b16 %v423
    %v492 = vunpack.c.l.b16 %v424
    %v493 = vunpack.c.l.b16 %v425
    %v494 = vunpack.c.l.b16 %v426
    %v495 = vunpack.c.l.b16 %v427
    %v496 = vunpack.c.l.b16 %v428
    %v497 = vunpack.c.l.b16 %v429
    %v498 = vunpack.c.l.b16 %v430
    %v499 = vunpack.c.l.b16 %v431
    %v500 = vunpack.c.l.b16 %v432
    %v501 = vpack.c.b16 %v470, %v469
    %v502 = vpack.c.b16 %v472, %v471
    %v503 = vpack.c.b16 %v474, %v473
    %v504 = vpack.c.b16 %v476, %v475
    %v505 = vpack.c.b16 %v478, %v477
    %v506 = vpack.c.b16 %v480, %v479
    %v507 = vpack.c.b16 %v482, %v481
    %v508 = vpack.c.b16 %v484, %v483
    %v509 = vpack.c.b16 %v486, %v485
    %v510 = vpack.c.b16 %v488, %v487
    %v511 = vpack.c.b16 %v490, %v489
    %v512 = vpack.c.b16 %v492, %v491
    %v513 = vpack.c.b16 %v494, %v493
    %v514 = vpack.c.b16 %v496, %v495
    %v515 = vpack.c.b16 %v498, %v497
    %v516 = vpack.c.b16 %v500, %v499
    %533 = vmatpush.bf16.msra.mxu0 %v508
    %534 = vmatpush.bf16.msra.mxu0 %v507
    %535 = vmatpush.bf16.msra.mxu0 %v506
    %536 = vmatpush.bf16.msra.mxu0 %v505
    %537 = vmatpush.bf16.msra.mxu0 %v504
    %538 = vmatpush.bf16.msra.mxu0 %v503
    %539 = vmatpush.bf16.msra.mxu0 %v502
    %540 = vmatpush.bf16.msra.mxu0 %v501
    %541 = vmatmul.bf16.gmra.mxu0 %v399
    %v542 = vpop.f32.mrf.mxu0
    %v543 = vadd.f32 %v435, %v542
    %v544 = vpop.f32.mrf.mxu0
    %545 = vdwg.mxu0
    %546 = vmatpush.bf16.msra.mxu0 %v516
    %547 = vmatpush.bf16.msra.mxu0 %v515
    %548 = vmatpush.bf16.msra.mxu0 %v514
    %549 = vmatpush.bf16.msra.mxu0 %v513
    %550 = vmatpush.bf16.msra.mxu0 %v512
    %551 = vmatpush.bf16.msra.mxu0 %v511
    %552 = vmatpush.bf16.msra.mxu0 %v510
    %553 = vmatpush.bf16.msra.mxu0 %v509
    %554 = vmatmul.bf16.gmra.mxu0 %v400
    %v555 = vpop.f32.mrf.mxu0
    %v556 = vadd.f32 %v543, %v555
    %v557 = vpop.f32.mrf.mxu0
    %558 = vdwg.mxu0
    %v559 = vmax.f32 %v556, 0.0
    %v560 = vpack.c.bf16 %v559, %v559
    %v561 = vld [vmem:[#allocation6] sm:$0xff]
    %v562 = vld [vmem:[#allocation6 + $0x8] sm:$0xff]
    %v563 = vld [vmem:[#allocation6 + $0x10] sm:$0xff]
    %v564 = vld [vmem:[#allocation6 + $0x18] sm:$0xff]
    %v565 = vld [vmem:[#allocation6 + $0x20] sm:$0xff]
    %v566 = vld [vmem:[#allocation6 + $0x28] sm:$0xff]
    %v567 = vld [vmem:[#allocation6 + $0x30] sm:$0xff]
    %v568 = vld [vmem:[#allocation6 + $0x38] sm:$0xff]
    %v569 = vld [vmem:[#allocation6 + $0x40] sm:$0xff]
    %v570 = vld [vmem:[#allocation6 + $0x48] sm:$0xff]
    %v571 = vld [vmem:[#allocation6 + $0x50] sm:$0xff]
    %v572 = vld [vmem:[#allocation6 + $0x58] sm:$0xff]
    %v573 = vld [vmem:[#allocation6 + $0x60] sm:$0xff]
    %v574 = vld [vmem:[#allocation6 + $0x68] sm:$0xff]
    %v575 = vld [vmem:[#allocation6 + $0x70] sm:$0xff]
    %v576 = vld [vmem:[#allocation6 + $0x78] sm:$0xff]
    %v577 = vld [vmem:[%s7] sm:$0x3]
    %v579 = vperm.slane %v577, 0
    %v580 = vperm.slane %v577, 1
    %v599 = vunpack.c.l.b16 %v561
    %v600 = vunpack.c.h.b16 %v561
    %v601 = vunpack.c.l.b16 %v562
    %v602 = vunpack.c.h.b16 %v562
    %v603 = vunpack.c.l.b16 %v563
    %v604 = vunpack.c.h.b16 %v563
    %v605 = vunpack.c.l.b16 %v564
    %v606 = vunpack.c.h.b16 %v564
    %v607 = vunpack.c.l.b16 %v565
    %v608 = vunpack.c.h.b16 %v565
    %v609 = vunpack.c.l.b16 %v566
    %v610 = vunpack.c.h.b16 %v566
    %v611 = vunpack.c.l.b16 %v567
    %v612 = vunpack.c.h.b16 %v567
    %v613 = vunpack.c.l.b16 %v568
    %v614 = vunpack.c.h.b16 %v568
    %v615 = vunpack.c.l.b16 %v569
    %v616 = vunpack.c.h.b16 %v569
    %v617 = vunpack.c.l.b16 %v570
    %v618 = vunpack.c.h.b16 %v570
    %v619 = vunpack.c.l.b16 %v571
    %v620 = vunpack.c.h.b16 %v571
    %v621 = vunpack.c.l.b16 %v572
    %v622 = vunpack.c.h.b16 %v572
    %v623 = vunpack.c.l.b16 %v573
    %v624 = vunpack.c.h.b16 %v573
    %v625 = vunpack.c.l.b16 %v574
    %v626 = vunpack.c.h.b16 %v574
    %v627 = vunpack.c.l.b16 %v575
    %v628 = vunpack.c.h.b16 %v575
    %v629 = vunpack.c.l.b16 %v576
    %v630 = vunpack.c.h.b16 %v576
    %v631 = vpack.c.b16 %v601, %v599
    %v632 = vpack.c.b16 %v602, %v600
    %v633 = vpack.c.b16 %v605, %v603
    %v634 = vpack.c.b16 %v606, %v604
    %v635 = vpack.c.b16 %v609, %v607
    %v636 = vpack.c.b16 %v610, %v608
    %v637 = vpack.c.b16 %v613, %v611
    %v638 = vpack.c.b16 %v614, %v612
    %v639 = vpack.c.b16 %v617, %v615
    %v640 = vpack.c.b16 %v618, %v616
    %v641 = vpack.c.b16 %v621, %v619
    %v642 = vpack.c.b16 %v622, %v620
    %v643 = vpack.c.b16 %v625, %v623
    %v644 = vpack.c.b16 %v626, %v624
    %v645 = vpack.c.b16 %v629, %v627
    %v646 = vpack.c.b16 %v630, %v628
    %663 = vmatpush.bf16.msra.mxu0 %v645
    %664 = vmatpush.bf16.msra.mxu0 %v643
    %665 = vmatpush.bf16.msra.mxu0 %v641
    %666 = vmatpush.bf16.msra.mxu0 %v639
    %667 = vmatpush.bf16.msra.mxu0 %v637
    %668 = vmatpush.bf16.msra.mxu0 %v635
    %669 = vmatpush.bf16.msra.mxu0 %v633
    %670 = vmatpush.bf16.msra.mxu0 %v631
    %671 = vmatmul.bf16.gmra.mxu0 %v560
    %v672 = vpop.f32.mrf.mxu0
    %v673 = vadd.f32 %v579, %v672
    %v674 = vpop.f32.mrf.mxu0
    %675 = vdwg.mxu0
    %676 = vmatpush.bf16.msra.mxu0 %v646
    %677 = vmatpush.bf16.msra.mxu0 %v644
    %678 = vmatpush.bf16.msra.mxu0 %v642
    %679 = vmatpush.bf16.msra.mxu0 %v640
    %680 = vmatpush.bf16.msra.mxu0 %v638
    %681 = vmatpush.bf16.msra.mxu0 %v636
    %682 = vmatpush.bf16.msra.mxu0 %v634
    %683 = vmatpush.bf16.msra.mxu0 %v632
    %684 = vmatmul.bf16.gmra.mxu0 %v560
    %v685 = vpop.f32.mrf.mxu0
    %v686 = vadd.f32 %v580, %v685
    %v687 = vpop.f32.mrf.mxu0
    %688 = vdwg.mxu0
    %v689 = vld [vmem:[%s1] sm:$0xff]
    %v690 = vmul.f32 %v686, 0.5
    %v691 = vmul.f32 %v690, 1.442695
    %v692 = vpow.pop %v691
    %v693 = vmul.f32 %v689, %v692
    %v694 = vadd.f32 %v673, %v693
    %695 = vst [vmem:[%s15] sm:$0xff] %v673
    %696 = vst [vmem:[%s16] sm:$0xff] %v686
    %697 = vst [vmem:[%s17] sm:$0xff] %v694
    %v698 = vpack.c.bf16 %v694, %v694
    %v699 = vld [vmem:[%s8] sm:$0xf]
    %v700 = vld [vmem:[%s8 + $0x4] sm:$0xf]
    %v701 = vld [vmem:[%s8 + $0x8] sm:$0xf]
    %v702 = vld [vmem:[%s8 + $0xc] sm:$0xf]
    %v703 = vld [vmem:[%s8 + $0x10] sm:$0xf]
    %v704 = vld [vmem:[%s8 + $0x14] sm:$0xf]
    %v705 = vld [vmem:[%s8 + $0x18] sm:$0xf]
    %v706 = vld [vmem:[%s8 + $0x1c] sm:$0xf]
    %v707 = vld [vmem:[%s8 + $0x20] sm:$0xf]
    %v708 = vld [vmem:[%s8 + $0x24] sm:$0xf]
    %v709 = vld [vmem:[%s8 + $0x28] sm:$0xf]
    %v710 = vld [vmem:[%s8 + $0x2c] sm:$0xf]
    %v711 = vld [vmem:[%s8 + $0x30] sm:$0xf]
    %v712 = vld [vmem:[%s8 + $0x34] sm:$0xf]
    %v713 = vld [vmem:[%s8 + $0x38] sm:$0xf]
    %v714 = vld [vmem:[%s8 + $0x3c] sm:$0xf]
    %v715 = vld [vmem:[#allocation7] sm:$0x1]
    %v717 = vperm.slane %v715, 0
    %v735 = vunpack.c.l.b16 %v699
    %v736 = vunpack.c.l.b16 %v700
    %v737 = vunpack.c.l.b16 %v701
    %v738 = vunpack.c.l.b16 %v702
    %v739 = vunpack.c.l.b16 %v703
    %v740 = vunpack.c.l.b16 %v704
    %v741 = vunpack.c.l.b16 %v705
    %v742 = vunpack.c.l.b16 %v706
    %v743 = vunpack.c.l.b16 %v707
    %v744 = vunpack.c.l.b16 %v708
    %v745 = vunpack.c.l.b16 %v709
    %v746 = vunpack.c.l.b16 %v710
    %v747 = vunpack.c.l.b16 %v711
    %v748 = vunpack.c.l.b16 %v712
    %v749 = vunpack.c.l.b16 %v713
    %v750 = vunpack.c.l.b16 %v714
    %v751 = vpack.c.b16 %v736, %v735
    %v752 = vpack.c.b16 %v738, %v737
    %v753 = vpack.c.b16 %v740, %v739
    %v754 = vpack.c.b16 %v742, %v741
    %v755 = vpack.c.b16 %v744, %v743
    %v756 = vpack.c.b16 %v746, %v745
    %v757 = vpack.c.b16 %v748, %v747
    %v758 = vpack.c.b16 %v750, %v749
    %767 = vmatpush.bf16.msra.mxu0 %v758
    %768 = vmatpush.bf16.msra.mxu0 %v757
    %769 = vmatpush.bf16.msra.mxu0 %v756
    %770 = vmatpush.bf16.msra.mxu0 %v755
    %771 = vmatpush.bf16.msra.mxu0 %v754
    %772 = vmatpush.bf16.msra.mxu0 %v753
    %773 = vmatpush.bf16.msra.mxu0 %v752
    %774 = vmatpush.bf16.msra.mxu0 %v751
    %775 = vmatmul.bf16.gmra.mxu0 %v698
    %v776 = vpop.f32.mrf.mxu0
    %v777 = vadd.f32 %v717, %v776
    %v778 = vpop.f32.mrf.mxu0
    %779 = vdwg.mxu0
    %v780 = vmax.f32 %v777, 0.0
    %v781 = vpack.c.bf16 %v780, %v780
    %v782 = vld [vmem:[#allocation9] sm:$0xff]
    %v783 = vld [vmem:[#allocation9 + $0x8] sm:$0xff]
    %v784 = vld [vmem:[#allocation9 + $0x10] sm:$0xff]
    %v785 = vld [vmem:[#allocation9 + $0x18] sm:$0xff]
    %v786 = vld [vmem:[#allocation9 + $0x20] sm:$0xff]
    %v787 = vld [vmem:[#allocation9 + $0x28] sm:$0xff]
    %v788 = vld [vmem:[#allocation9 + $0x30] sm:$0xff]
    %v789 = vld [vmem:[#allocation9 + $0x38] sm:$0xff]
    %v790 = vld [vmem:[#allocation9 + $0x40] sm:$0xff]
    %v791 = vld [vmem:[#allocation9 + $0x48] sm:$0xff]
    %v792 = vld [vmem:[#allocation9 + $0x50] sm:$0xff]
    %v793 = vld [vmem:[#allocation9 + $0x58] sm:$0xff]
    %v794 = vld [vmem:[#allocation9 + $0x60] sm:$0xff]
    %v795 = vld [vmem:[#allocation9 + $0x68] sm:$0xff]
    %v796 = vld [vmem:[#allocation9 + $0x70] sm:$0xff]
    %v797 = vld [vmem:[#allocation9 + $0x78] sm:$0xff]
    %v798 = vld [vmem:[%s11] sm:$0x3]
    %v800 = vperm.slane %v798, 0
    %v801 = vperm.slane %v798, 1
    %v820 = vunpack.c.l.b16 %v782
    %v821 = vunpack.c.h.b16 %v782
    %v822 = vunpack.c.l.b16 %v783
    %v823 = vunpack.c.h.b16 %v783
    %v824 = vunpack.c.l.b16 %v784
    %v825 = vunpack.c.h.b16 %v784
    %v826 = vunpack.c.l.b16 %v785
    %v827 = vunpack.c.h.b16 %v785
    %v828 = vunpack.c.l.b16 %v786
    %v829 = vunpack.c.h.b16 %v786
    %v830 = vunpack.c.l.b16 %v787
    %v831 = vunpack.c.h.b16 %v787
    %v832 = vunpack.c.l.b16 %v788
    %v833 = vunpack.c.h.b16 %v788
    %v834 = vunpack.c.l.b16 %v789
    %v835 = vunpack.c.h.b16 %v789
    %v836 = vunpack.c.l.b16 %v790
    %v837 = vunpack.c.h.b16 %v790
    %v838 = vunpack.c.l.b16 %v791
    %v839 = vunpack.c.h.b16 %v791
    %v840 = vunpack.c.l.b16 %v792
    %v841 = vunpack.c.h.b16 %v792
    %v842 = vunpack.c.l.b16 %v793
    %v843 = vunpack.c.h.b16 %v793
    %v844 = vunpack.c.l.b16 %v794
    %v845 = vunpack.c.h.b16 %v794
    %v846 = vunpack.c.l.b16 %v795
    %v847 = vunpack.c.h.b16 %v795
    %v848 = vunpack.c.l.b16 %v796
    %v849 = vunpack.c.h.b16 %v796
    %v850 = vunpack.c.l.b16 %v797
    %v851 = vunpack.c.h.b16 %v797
    %v852 = vpack.c.b16 %v822, %v820
    %v853 = vpack.c.b16 %v823, %v821
    %v854 = vpack.c.b16 %v826, %v824
    %v855 = vpack.c.b16 %v827, %v825
    %v856 = vpack.c.b16 %v830, %v828
    %v857 = vpack.c.b16 %v831, %v829
    %v858 = vpack.c.b16 %v834, %v832
    %v859 = vpack.c.b16 %v835, %v833
    %v860 = vpack.c.b16 %v838, %v836
    %v861 = vpack.c.b16 %v839, %v837
    %v862 = vpack.c.b16 %v842, %v840
    %v863 = vpack.c.b16 %v843, %v841
    %v864 = vpack.c.b16 %v846, %v844
    %v865 = vpack.c.b16 %v847, %v845
    %v866 = vpack.c.b16 %v850, %v848
    %v867 = vpack.c.b16 %v851, %v849
    %884 = vmatpush.bf16.msra.mxu0 %v866
    %885 = vmatpush.bf16.msra.mxu0 %v864
    %886 = vmatpush.bf16.msra.mxu0 %v862
    %887 = vmatpush.bf16.msra.mxu0 %v860
    %888 = vmatpush.bf16.msra.mxu0 %v858
    %889 = vmatpush.bf16.msra.mxu0 %v856
    %890 = vmatpush.bf16.msra.mxu0 %v854
    %891 = vmatpush.bf16.msra.mxu0 %v852
    %892 = vmatmul.bf16.gmra.mxu0 %v781
    %v893 = vpop.f32.mrf.mxu0
    %v894 = vadd.f32 %v800, %v893
    %v895 = vpop.f32.mrf.mxu0
    %896 = vdwg.mxu0
    %897 = vmatpush.bf16.msra.mxu0 %v867
    %898 = vmatpush.bf16.msra.mxu0 %v865
    %899 = vmatpush.bf16.msra.mxu0 %v863
    %900 = vmatpush.bf16.msra.mxu0 %v861
    %901 = vmatpush.bf16.msra.mxu0 %v859
    %902 = vmatpush.bf16.msra.mxu0 %v857
    %903 = vmatpush.bf16.msra.mxu0 %v855
    %904 = vmatpush.bf16.msra.mxu0 %v853
    %905 = vmatmul.bf16.gmra.mxu0 %v781
    %v906 = vpop.f32.mrf.mxu0
    %v907 = vadd.f32 %v801, %v906
    %v908 = vpop.f32.mrf.mxu0
    %909 = vdwg.mxu0
    %v910 = vpack.c.bf16 %v894, %v894
    %v911 = vpack.c.bf16 %v907, %v907
    %v912 = vld [vmem:[#allocation10] sm:$0xff]
    %v913 = vld [vmem:[#allocation10 + $0x8] sm:$0xff]
    %v914 = vld [vmem:[#allocation10 + $0x10] sm:$0xff]
    %v915 = vld [vmem:[#allocation10 + $0x18] sm:$0xff]
    %v916 = vld [vmem:[#allocation10 + $0x20] sm:$0xff]
    %v917 = vld [vmem:[#allocation10 + $0x28] sm:$0xff]
    %v918 = vld [vmem:[#allocation10 + $0x30] sm:$0xff]
    %v919 = vld [vmem:[#allocation10 + $0x38] sm:$0xff]
    %v920 = vld [vmem:[#allocation10 + $0x40] sm:$0xff]
    %v921 = vld [vmem:[#allocation10 + $0x48] sm:$0xff]
    %v922 = vld [vmem:[#allocation10 + $0x50] sm:$0xff]
    %v923 = vld [vmem:[#allocation10 + $0x58] sm:$0xff]
    %v924 = vld [vmem:[#allocation10 + $0x60] sm:$0xff]
    %v925 = vld [vmem:[#allocation10 + $0x68] sm:$0xff]
    %v926 = vld [vmem:[#allocation10 + $0x70] sm:$0xff]
    %v927 = vld [vmem:[#allocation10 + $0x78] sm:$0xff]
    %v928 = vld [vmem:[#allocation10 + $0x80] sm:$0xff]
    %v929 = vld [vmem:[#allocation10 + $0x88] sm:$0xff]
    %v930 = vld [vmem:[#allocation10 + $0x90] sm:$0xff]
    %v931 = vld [vmem:[#allocation10 + $0x98] sm:$0xff]
    %v932 = vld [vmem:[#allocation10 + $0xa0] sm:$0xff]
    %v933 = vld [vmem:[#allocation10 + $0xa8] sm:$0xff]
    %v934 = vld [vmem:[#allocation10 + $0xb0] sm:$0xff]
    %v935 = vld [vmem:[#allocation10 + $0xb8] sm:$0xff]
    %v936 = vld [vmem:[#allocation10 + $0xc0] sm:$0xff]
    %v937 = vld [vmem:[#allocation10 + $0xc8] sm:$0xff]
    %v938 = vld [vmem:[#allocation10 + $0xd0] sm:$0xff]
    %v939 = vld [vmem:[#allocation10 + $0xd8] sm:$0xff]
    %v940 = vld [vmem:[#allocation10 + $0xe0] sm:$0xff]
    %v941 = vld [vmem:[#allocation10 + $0xe8] sm:$0xff]
    %v942 = vld [vmem:[#allocation10 + $0xf0] sm:$0xff]
    %v943 = vld [vmem:[#allocation10 + $0xf8] sm:$0xff]
    %v944 = vld [vmem:[%s13] sm:$0x3]
    %v946 = vperm.slane %v944, 0
    %v947 = vperm.slane %v944, 1
    %v982 = vunpack.c.l.b16 %v912
    %v983 = vunpack.c.h.b16 %v912
    %v984 = vunpack.c.l.b16 %v913
    %v985 = vunpack.c.h.b16 %v913
    %v986 = vunpack.c.l.b16 %v914
    %v987 = vunpack.c.h.b16 %v914
    %v988 = vunpack.c.l.b16 %v915
    %v989 = vunpack.c.h.b16 %v915
    %v990 = vunpack.c.l.b16 %v916
    %v991 = vunpack.c.h.b16 %v916
    %v992 = vunpack.c.l.b16 %v917
    %v993 = vunpack.c.h.b16 %v917
    %v994 = vunpack.c.l.b16 %v918
    %v995 = vunpack.c.h.b16 %v918
    %v996 = vunpack.c.l.b16 %v919
    %v997 = vunpack.c.h.b16 %v919
    %v998 = vunpack.c.l.b16 %v920
    %v999 = vunpack.c.h.b16 %v920
    %v1000 = vunpack.c.l.b16 %v921
    %v1001 = vunpack.c.h.b16 %v921
    %v1002 = vunpack.c.l.b16 %v922
    %v1003 = vunpack.c.h.b16 %v922
    %v1004 = vunpack.c.l.b16 %v923
    %v1005 = vunpack.c.h.b16 %v923
    %v1006 = vunpack.c.l.b16 %v924
    %v1007 = vunpack.c.h.b16 %v924
    %v1008 = vunpack.c.l.b16 %v925
    %v1009 = vunpack.c.h.b16 %v925
    %v1010 = vunpack.c.l.b16 %v926
    %v1011 = vunpack.c.h.b16 %v926
    %v1012 = vunpack.c.l.b16 %v927
    %v1013 = vunpack.c.h.b16 %v927
    %v1014 = vunpack.c.l.b16 %v928
    %v1015 = vunpack.c.h.b16 %v928
    %v1016 = vunpack.c.l.b16 %v929
    %v1017 = vunpack.c.h.b16 %v929
    %v1018 = vunpack.c.l.b16 %v930
    %v1019 = vunpack.c.h.b16 %v930
    %v1020 = vunpack.c.l.b16 %v931
    %v1021 = vunpack.c.h.b16 %v931
    %v1022 = vunpack.c.l.b16 %v932
    %v1023 = vunpack.c.h.b16 %v932
    %v1024 = vunpack.c.l.b16 %v933
    %v1025 = vunpack.c.h.b16 %v933
    %v1026 = vunpack.c.l.b16 %v934
    %v1027 = vunpack.c.h.b16 %v934
    %v1028 = vunpack.c.l.b16 %v935
    %v1029 = vunpack.c.h.b16 %v935
    %v1030 = vunpack.c.l.b16 %v936
    %v1031 = vunpack.c.h.b16 %v936
    %v1032 = vunpack.c.l.b16 %v937
    %v1033 = vunpack.c.h.b16 %v937
    %v1034 = vunpack.c.l.b16 %v938
    %v1035 = vunpack.c.h.b16 %v938
    %v1036 = vunpack.c.l.b16 %v939
    %v1037 = vunpack.c.h.b16 %v939
    %v1038 = vunpack.c.l.b16 %v940
    %v1039 = vunpack.c.h.b16 %v940
    %v1040 = vunpack.c.l.b16 %v941
    %v1041 = vunpack.c.h.b16 %v941
    %v1042 = vunpack.c.l.b16 %v942
    %v1043 = vunpack.c.h.b16 %v942
    %v1044 = vunpack.c.l.b16 %v943
    %v1045 = vunpack.c.h.b16 %v943
    %v1046 = vpack.c.b16 %v984, %v982
    %v1047 = vpack.c.b16 %v985, %v983
    %v1048 = vpack.c.b16 %v988, %v986
    %v1049 = vpack.c.b16 %v989, %v987
    %v1050 = vpack.c.b16 %v992, %v990
    %v1051 = vpack.c.b16 %v993, %v991
    %v1052 = vpack.c.b16 %v996, %v994
    %v1053 = vpack.c.b16 %v997, %v995
    %v1054 = vpack.c.b16 %v1000, %v998
    %v1055 = vpack.c.b16 %v1001, %v999
    %v1056 = vpack.c.b16 %v1004, %v1002
    %v1057 = vpack.c.b16 %v1005, %v1003
    %v1058 = vpack.c.b16 %v1008, %v1006
    %v1059 = vpack.c.b16 %v1009, %v1007
    %v1060 = vpack.c.b16 %v1012, %v1010
    %v1061 = vpack.c.b16 %v1013, %v1011
    %v1062 = vpack.c.b16 %v1016, %v1014
    %v1063 = vpack.c.b16 %v1017, %v1015
    %v1064 = vpack.c.b16 %v1020, %v1018
    %v1065 = vpack.c.b16 %v1021, %v1019
    %v1066 = vpack.c.b16 %v1024, %v1022
    %v1067 = vpack.c.b16 %v1025, %v1023
    %v1068 = vpack.c.b16 %v1028, %v1026
    %v1069 = vpack.c.b16 %v1029, %v1027
    %v1070 = vpack.c.b16 %v1032, %v1030
    %v1071 = vpack.c.b16 %v1033, %v1031
    %v1072 = vpack.c.b16 %v1036, %v1034
    %v1073 = vpack.c.b16 %v1037, %v1035
    %v1074 = vpack.c.b16 %v1040, %v1038
    %v1075 = vpack.c.b16 %v1041, %v1039
    %v1076 = vpack.c.b16 %v1044, %v1042
    %v1077 = vpack.c.b16 %v1045, %v1043
    %1110 = vmatpush.bf16.msra.mxu0 %v1060
    %1111 = vmatpush.bf16.msra.mxu0 %v1058
    %1112 = vmatpush.bf16.msra.mxu0 %v1056
    %1113 = vmatpush.bf16.msra.mxu0 %v1054
    %1114 = vmatpush.bf16.msra.mxu0 %v1052
    %1115 = vmatpush.bf16.msra.mxu0 %v1050
    %1116 = vmatpush.bf16.msra.mxu0 %v1048
    %1117 = vmatpush.bf16.msra.mxu0 %v1046
    %1118 = vmatmul.bf16.gmra.mxu0 %v910
    %v1119 = vpop.f32.mrf.mxu0
    %v1120 = vadd.f32 %v946, %v1119
    %v1121 = vpop.f32.mrf.mxu0
    %1122 = vdwg.mxu0
    %1123 = vmatpush.bf16.msra.mxu0 %v1076
    %1124 = vmatpush.bf16.msra.mxu0 %v1074
    %1125 = vmatpush.bf16.msra.mxu0 %v1072
    %1126 = vmatpush.bf16.msra.mxu0 %v1070
    %1127 = vmatpush.bf16.msra.mxu0 %v1068
    %1128 = vmatpush.bf16.msra.mxu0 %v1066
    %1129 = vmatpush.bf16.msra.mxu0 %v1064
    %1130 = vmatpush.bf16.msra.mxu0 %v1062
    %1131 = vmatmul.bf16.gmra.mxu0 %v911
    %v1132 = vpop.f32.mrf.mxu0
    %v1133 = vadd.f32 %v1120, %v1132
    %v1134 = vpop.f32.mrf.mxu0
    %1135 = vdwg.mxu0
    %1136 = vmatpush.bf16.msra.mxu0 %v1061
    %1137 = vmatpush.bf16.msra.mxu0 %v1059
    %1138 = vmatpush.bf16.msra.mxu0 %v1057
    %1139 = vmatpush.bf16.msra.mxu0 %v1055
    %1140 = vmatpush.bf16.msra.mxu0 %v1053
    %1141 = vmatpush.bf16.msra.mxu0 %v1051
    %1142 = vmatpush.bf16.msra.mxu0 %v1049
    %1143 = vmatpush.bf16.msra.mxu0 %v1047
    %1144 = vmatmul.bf16.gmra.mxu0 %v910
    %v1145 = vpop.f32.mrf.mxu0
    %v1146 = vadd.f32 %v947, %v1145
    %v1147 = vpop.f32.mrf.mxu0
    %1148 = vdwg.mxu0
    %1149 = vmatpush.bf16.msra.mxu0 %v1077
    %1150 = vmatpush.bf16.msra.mxu0 %v1075
    %1151 = vmatpush.bf16.msra.mxu0 %v1073
    %1152 = vmatpush.bf16.msra.mxu0 %v1071
    %1153 = vmatpush.bf16.msra.mxu0 %v1069
    %1154 = vmatpush.bf16.msra.mxu0 %v1067
    %1155 = vmatpush.bf16.msra.mxu0 %v1065
    %1156 = vmatpush.bf16.msra.mxu0 %v1063
    %1157 = vmatmul.bf16.gmra.mxu0 %v911
    %v1158 = vpop.f32.mrf.mxu0
    %v1159 = vadd.f32 %v1146, %v1158
    %v1160 = vpop.f32.mrf.mxu0
    %1161 = vdwg.mxu0
    %1162 = vst [vmem:[%s14] sm:$0xff] %v1133
    %1163 = vst [vmem:[%s14 + $0x8] sm:$0xff] %v1159
    // Predicated region
    $region82: #{forward.1} parent=1 // pred_check
      _
    $region83: #{forward.1} parent=1 // pred_check_branch
      %1165 = sbr.rel (0) target = $region85
    $region84: #{forward.1} parent=1 // pred_region
      _
    $region85: #{forward.1} parent=1 // pred_fallthru
      _
    // Predicated region
    $region86: #{forward.1} parent=1 // pred_check
      _
    $region87: #{forward.1} parent=1 // pred_check_branch
      %1167 = sbr.rel (0) target = $region89
    $region88: #{forward.1} parent=1 // pred_region
      _
    $region89: #{forward.1} parent=1 // pred_fallthru
      _
    // Predicated region
    $region90: #{forward.1} parent=1 // pred_check
      _
    $region91: #{forward.1} parent=1 // pred_check_branch
      %1169 = sbr.rel (0) target = $region93
    $region92: #{forward.1} parent=1 // pred_region
      _
    $region93: #{forward.1} parent=1 // pred_fallthru
      _
    // Predicated region
    $region94: #{forward.1} parent=1 // pred_check
      _
    $region95: #{forward.1} parent=1 // pred_check_branch
      %1171 = sbr.rel (0) target = $region97
    $region96: #{forward.1} parent=1 // pred_region
      _
    $region97: #{forward.1} parent=1 // pred_fallthru
      _
    // Predicated region
    $region98: #{forward.1} parent=1 // pred_check
      _
    $region99: #{forward.1} parent=1 // pred_check_branch
      %1173 = sbr.rel (0) target = $region101
    $region100: #{forward.1} parent=1 // pred_region
      _
    $region101: #{forward.1} parent=1 // pred_fallthru
      _
    // Predicated region
    $region102: #{forward.1} parent=1 // pred_check
      _
    $region103: #{forward.1} parent=1 // pred_check_branch
      %1175 = sbr.rel (0) target = $region105
    $region104: #{forward.1} parent=1 // pred_region
      _
    $region105: #{forward.1} parent=1 // pred_fallthru
      _
    // Predicated region
    $region106: #{forward.1} parent=1 // pred_check
      _
    $region107: #{forward.1} parent=1 // pred_check_branch
      %1177 = sbr.rel (0) target = $region109
    $region108: #{forward.1} parent=1 // pred_region
      _
    $region109: #{forward.1} parent=1 // pred_fallthru
      _
    // Predicated region
    $region110: #{forward.1} parent=1 // pred_check
      _
    $region111: #{forward.1} parent=1 // pred_check_branch
      %1179 = sbr.rel (0) target = $region113
    $region112: #{forward.1} parent=1 // pred_region
      _
    $region113: #{forward.1} parent=1 // pred_fallthru
      _
    %1180 = vsyncpa [#allocation3], 1
    %1181 = vsyncpa [#allocation5], 1
    %1182 = vsyncpa [#allocation8], 1
    %1183 = vsyncpa [#allocation11], 1

</llo_original>
